<compile_context>
chip_gen: v5e
topology: v5e:2x2
jax: 0.10.0
libtpu: 0.0.40
codegen_flags: <defaults>
</compile_context>

<pallas_src>
import functools
import math

import numpy as np

import jax
import jax.numpy as jnp
from jax.experimental import pallas as pl
from jax.experimental.pallas import tpu as pltpu

_LANES = 128                 # vreg lane width
_SUBLANE_MULT = 32           # row-block granularity valid for f32/bf16/int8
_TILE_BYTES = 4096           # one full vreg tile: (8,128) f32 == (16,128) bf16
_SPLIT_BYTES = 1 << 20       # force >= 2 grid steps above this (v7x: 2 TCs)


def _cdiv(a, b):
    return -(-a // b)


def _round_up(a, m):
    return _cdiv(a, m) * m


@functools.lru_cache(maxsize=1)
def _tpu_config():
    """(target block bytes per buffer, vmem_limit_bytes, native bf16 math?)."""
    kind = ""
    try:
        dev = jax.devices()[0]
        if dev.platform == "tpu":
            kind = dev.device_kind.lower()
    except Exception:  # defensive only; fall back to conservative settings
        pass
    native_bf16 = ("v6" in kind) or ("v7" in kind) or ("7x" in kind)
    if ("v5" in kind) or ("v6" in kind):
        # 128 MiB physical VMEM: large blocks, 4 pipelined buffers fit easily.
        return 8 << 20, 64 << 20, native_bf16
    # v7x (64 MiB VMEM per TensorCore) and unknown chips: stay conservative.
    return 4 << 20, 48 << 20, native_bf16


@functools.lru_cache(maxsize=None)
def _poly_coeffs(t):
    """Degree-7 odd near-minimax fit of t*sin(pi*u/(2t)) on u in [0, t].

    Returns (d0, d1, d2, d3) such that u*(d0 + d1*u^2 + d2*u^4 + d3*u^6)
    approximates t*sin(a*u) with |err| ~ 2e-6 for t=2.21.  Both the frequency
    a and the scale t are folded into the coefficients, and the cap is pinned
    so the fit equals t (in f64) at u == t.
    """
    a = math.pi / 2.0 / t
    nodes = 512
    theta = (np.arange(nodes, dtype=np.float64) + 0.5) * (np.pi / nodes)
    u = 0.5 * t * (1.0 + np.cos(theta))           # Chebyshev-density nodes in (0, t)
    basis = np.stack([u, u ** 3, u ** 5, u ** 7], axis=1)
    d, *_ = np.linalg.lstsq(basis, t * np.sin(a * u), rcond=None)
    d[0] += 1.0 - float(d[0] + d[1] * t ** 2 + d[2] * t ** 4 + d[3] * t ** 6)
    return tuple(float(v) for v in d)


def _srelu_kernel(x_ref, o_ref, *, t, coeffs, compute_dtype):
    x = x_ref[...].astype(compute_dtype)
    tt = jnp.asarray(t, compute_dtype)
    zero = jnp.asarray(0.0, compute_dtype)
    d0, d1, d2, d3 = [jnp.asarray(c, compute_dtype) for c in coeffs]
    # clip(x, 0, t): the fitted sine ramp is 0 at u=0 and t at u=t, so the clip
    # alone reproduces all three branches (NaNs still propagate). ~11 VALU
    # ops/element total (clip 2, square 1, Horner 6, scale 1, cap 1).
    u = jnp.clip(x, zero, tt)
    w = u * u
    p = d3 * w + d2
    p = p * w + d1
    p = p * w + d0
    y = u * p
    y = jnp.minimum(y, tt)          # never overshoot the cap
    o_ref[...] = y.astype(o_ref.dtype)


def _choose_block_units(total_units, unit_bytes, gran, target_block_bytes):
    """Block size (in `gran`-aligned units) for a single-axis grid.

    Arrays below _SPLIT_BYTES run as one full-extent block (always a legal
    block shape).  Larger arrays are split into >= 2 (even) roughly equal
    blocks capped at target_block_bytes, so both v7x TensorCores get balanced
    work and the boundary block is never a tiny remainder.
    """
    if total_units * unit_bytes <= _SPLIT_BYTES:
        return total_units
    target_units = max(gran, (target_block_bytes // unit_bytes) // gran * gran)
    nblk = max(2, _cdiv(total_units, target_units))
    if nblk % 2:
        nblk += 1
    return min(_round_up(_cdiv(total_units, nblk), gran), total_units)


def srelu_forward(x, t=2.21, inplace=False):
    """Pallas TPU implementation of SReLU_cuda.forward.

    With inplace=True the output aliases the input buffer via
    input_output_aliases (donate `x` at the jit boundary to avoid a defensive
    copy); otherwise a fresh output is allocated.
    """
    orig_shape = x.shape
    orig_dtype = x.dtype
    if not jnp.issubdtype(orig_dtype, jnp.floating):
        raise TypeError(f"srelu_forward expects a floating-point input, got {orig_dtype}")
    n = x.size
    if n == 0:
        return x

    target_block_bytes, vmem_limit, native_bf16 = _tpu_config()
    compute_dtype = (
        jnp.bfloat16 if (orig_dtype == jnp.bfloat16 and native_bf16) else jnp.float32
    )
    kernel = functools.partial(
        _srelu_kernel,
        t=float(t),
        coeffs=_poly_coeffs(float(t)),
        compute_dtype=compute_dtype,
    )
    compiler_params = pltpu.CompilerParams(
        dimension_semantics=("parallel",),
        vmem_limit_bytes=vmem_limit,
    )
    io_aliases = {0: 0} if inplace else {}
    itemsize = jnp.dtype(orig_dtype).itemsize
    flat = x.reshape(-1)

    if n % _LANES == 0:
        # Lane-aligned: dense 2-D (rows, 128) view with lane-dense blocks.
        rows = n // _LANES
        block_rows = _choose_block_units(
            rows, _LANES * itemsize, _SUBLANE_MULT, target_block_bytes)
        out = pl.pallas_call(
            kernel,
            out_shape=jax.ShapeDtypeStruct((rows, _LANES), orig_dtype),
            grid_spec=pltpu.PrefetchScalarGridSpec(
                num_scalar_prefetch=0,
                grid=(_cdiv(rows, block_rows),),
                in_specs=[pl.BlockSpec((block_rows, _LANES), lambda i: (i, 0))],
                out_specs=pl.BlockSpec((block_rows, _LANES), lambda i: (i, 0)),
            ),
            compiler_params=compiler_params,
            input_output_aliases=io_aliases,
        )(flat.reshape(rows, _LANES))
    else:
        # Ragged element count: run directly on the flat 1-D array.  Blocks are
        # whole vreg tiles (multiples of 1024/2048 elements, i.e. multiples of
        # 128 lanes); Pallas masks the single ragged boundary block, so there
        # is no jnp.pad / output slice (which previously tripled HBM traffic).
        block_elems = _choose_block_units(
            n, itemsize, _TILE_BYTES // itemsize, target_block_bytes)
        out = pl.pallas_call(
            kernel,
            out_shape=jax.ShapeDtypeStruct((n,), orig_dtype),
            grid_spec=pltpu.PrefetchScalarGridSpec(
                num_scalar_prefetch=0,
                grid=(_cdiv(n, block_elems),),
                in_specs=[pl.BlockSpec((block_elems,), lambda i: (i,))],
                out_specs=pl.BlockSpec((block_elems,), lambda i: (i,)),
            ),
            compiler_params=compiler_params,
            input_output_aliases=io_aliases,
        )(flat)

    return out.reshape(orig_shape)


class SReLU:
    """Thin stateless wrapper mirroring the PyTorch module's constructor."""

    def __init__(self, t=2.21, inplace=False):
        self.t = float(t)
        self.a = float(math.pi / 2.0 / self.t)   # kept for API parity
        self.inplace = inplace

    def __call__(self, x):
        return srelu_forward(x, t=self.t, inplace=self.inplace)


def _srelu_ref(x, t=2.21):
    a = math.pi / 2.0 / float(t)
    xf = x.astype(jnp.float32)
    y = jnp.where(xf <= 0.0, 0.0, jnp.where(xf >= t, t, t * jnp.sin(a * xf)))
    return y.astype(x.dtype)


# TODO(synk): backward pass (srelu_cuda.backward) not implemented; only the
# forward pass of the module is translated.

if __name__ == "__main__":
    key = jax.random.PRNGKey(0)
    mod = SReLU(t=2.21, inplace=False)

    # 1) Primary: NCHW activations, batch=2, channels=4, spatial 16x16, f32.
    x = jax.random.normal(key, (2, 4, 16, 16), dtype=jnp.float32) * 2.0
    y = jax.block_until_ready(mod(x))
    assert y.shape == x.shape and y.dtype == x.dtype
    assert jnp.allclose(y, _srelu_ref(x, t=2.21), atol=1e-5, rtol=1e-5), "f32 mismatch"

    # 2) Ragged element count (single full-extent 1-D block, no padding copies).
    x2 = jax.random.normal(jax.random.PRNGKey(1), (3, 5, 7, 11), dtype=jnp.float32) * 3.0
    y2 = jax.block_until_ready(mod(x2))
    assert y2.shape == x2.shape and y2.dtype == x2.dtype
    assert jnp.allclose(y2, _srelu_ref(x2, t=2.21), atol=1e-5, rtol=1e-5), "ragged mismatch"

    # 3) bf16 (computed natively in bf16 on v6e/v7x, via f32 on older chips).
    x3 = (jax.random.normal(jax.random.PRNGKey(2), (2, 8, 16, 16), dtype=jnp.float32)
          * 2.0).astype(jnp.bfloat16)
    y3 = jax.block_until_ready(mod(x3))
    assert y3.shape == x3.shape and y3.dtype == x3.dtype
    assert jnp.allclose(y3.astype(jnp.float32), _srelu_ref(x3, t=2.21).astype(jnp.float32),
                        atol=3e-2, rtol=2e-2), "bf16 mismatch"

    # 4) Aligned, >1 MiB: exercises the multi-block grid (2 TCs on v7x).
    x4 = jax.random.normal(jax.random.PRNGKey(3), (2, 9, 128, 128), dtype=jnp.float32)
    y4 = jax.block_until_ready(mod(x4))
    assert jnp.allclose(y4, _srelu_ref(x4, t=2.21), atol=1e-5, rtol=1e-5), "large aligned mismatch"

    # 5) Ragged, >1 MiB: multi-block 1-D grid with a masked boundary block.
    x5 = jax.random.normal(jax.random.PRNGKey(4), (5, 7, 97, 113), dtype=jnp.float32) * 2.0
    y5 = jax.block_until_ready(mod(x5))
    assert jnp.allclose(y5, _srelu_ref(x5, t=2.21), atol=1e-5, rtol=1e-5), "large ragged mismatch"

    print("KERNEL_OK")
</pallas_src>

<mosaic_0001>
module attributes {stable_mosaic.version = 11 : i64} {
  func.func @_srelu_kernel(%arg0: i32, %arg1: memref<16x128xf32, #tpu.memory_space<vmem>>, %arg2: memref<16x128xf32, #tpu.memory_space<vmem>>) attributes {dimension_semantics = [#tpu.dimension_semantics<parallel>], iteration_bounds = array<i64: 1>, scalar_prefetch = 0 : i64, scratch_operands = 0 : i64, tpu.core_type = #tpu.core_type<tc>, window_params = [{transform_indices = @transform_0, window_bounds = array<i64: 16, 128>}, {transform_indices = @transform_1, window_bounds = array<i64: 16, 128>}]} {
    %c0 = arith.constant 0 : index
    %c0_0 = arith.constant 0 : index
    %0 = vector.load %arg1[%c0, %c0_0] : memref<16x128xf32, #tpu.memory_space<vmem>>, vector<16x128xf32>
    %cst = arith.constant 0.000000e+00 : f32
    %cst_1 = arith.constant 2.210000e+00 : f32
    %1 = vector.broadcast %cst : f32 to vector<16x128xf32>
    %2 = arith.maximumf %1, %0 : vector<16x128xf32>
    %3 = vector.broadcast %cst_1 : f32 to vector<16x128xf32>
    %4 = arith.minimumf %3, %2 : vector<16x128xf32>
    %5 = arith.mulf %4, %4 : vector<16x128xf32>
    %cst_2 = arith.constant -3.72407812E-5 : f32
    %6 = vector.broadcast %cst_2 : f32 to vector<16x128xf32>
    %7 = arith.mulf %6, %5 : vector<16x128xf32>
    %cst_3 = arith.constant 0.00333040813 : f32
    %8 = vector.broadcast %cst_3 : f32 to vector<16x128xf32>
    %9 = arith.addf %7, %8 : vector<16x128xf32>
    %10 = arith.mulf %9, %5 : vector<16x128xf32>
    %cst_4 = arith.constant -0.132245183 : f32
    %11 = vector.broadcast %cst_4 : f32 to vector<16x128xf32>
    %12 = arith.addf %10, %11 : vector<16x128xf32>
    %13 = arith.mulf %12, %5 : vector<16x128xf32>
    %cst_5 = arith.constant 1.57079256 : f32
    %14 = vector.broadcast %cst_5 : f32 to vector<16x128xf32>
    %15 = arith.addf %13, %14 : vector<16x128xf32>
    %16 = arith.mulf %4, %15 : vector<16x128xf32>
    %cst_6 = arith.constant 2.210000e+00 : f32
    %17 = vector.broadcast %cst_6 : f32 to vector<16x128xf32>
    %18 = arith.minimumf %16, %17 : vector<16x128xf32>
    %c0_7 = arith.constant 0 : index
    %c0_8 = arith.constant 0 : index
    %19 = vector.load %arg2[%c0_7, %c0_8] : memref<16x128xf32, #tpu.memory_space<vmem>>, vector<16x128xf32>
    tpu.vector_store %arg2[%c0_7, %c0_8], %18 {strides = array<i32>} : memref<16x128xf32, #tpu.memory_space<vmem>>, vector<16x128xf32>,
    return
  }
  func.func @transform_0(%arg0: i32) -> (i32, i32) {
    %c0_i32 = arith.constant 0 : i32
    %c0_i32_0 = arith.constant 0 : i32
    return %arg0, %c0_i32 : i32, i32
  }
  func.func @transform_1(%arg0: i32) -> (i32, i32) {
    %c0_i32 = arith.constant 0 : i32
    %c0_i32_0 = arith.constant 0 : i32
    return %arg0, %c0_i32 : i32, i32
  }
}

</mosaic_0001>

<llo_original>
// kernel: tpu_custom_call.1
$region0: #{tpu_custom_call.1}
  #allocation0 [shape = 'u32[]', space=smem, size = 0x4, offset = 0x4, fixed_abs, tag = 'smem constant byte address 0x4 - core index']
  #allocation1 [shape = 'u32[72,128]{1,0:T(1,128)}', space=vmem, size = 0x9000, scoped, tag = 'internal scratch']
  %s0 = inlined_call_operand.hbm [shape: f32[16,128], index: 0, kind: input, shape index: {}]
  %s1 = inlined_call_operand.hbm [shape: f32[16,128], index: 1, kind: output, shape index: {}]
  %s2 = sld [smem:[#allocation0]]
  $region18: #{tpu_custom_call.1} parent=0
    _
  %s4 = ssub.s32 1, %s2
  %s5 = scalar_select 0, %s4, %s2
  $region1: #{tpu_custom_call.1} parent=0
    #allocation2 [shape = 'u8[8192]{0}', space=vmem, size = 0x2000, scoped, tag = 'input window, operand 0, single buffered']
    #allocation3 [shape = 's32[1]{0}', space=sflag, size = 0x4, scoped, tag = 'scoped memory for tpu_custom_call.1']
    #allocation4 [shape = 's32[1]{0}', space=sflag, size = 0x4, scoped, tag = 'scoped memory for tpu_custom_call.1']
    #allocation5 [shape = 'u8[8192]{0}', space=vmem, size = 0x2000, scoped, tag = 'output window, operand 0, single buffered']
    %6 = vsyncpa [#allocation3], 0
    %7 = vsyncpa [#allocation4], 0
    // Predicated region
    $region2: #{tpu_custom_call.1} parent=1 // pred_check
      _
    $region3: #{tpu_custom_call.1} parent=1 // pred_check_branch
      %9 = sbr.rel (0) target = $region5
    $region4: #{tpu_custom_call.1} parent=1 // pred_region
      %11 = vsyncadd [#allocation3], 0
      %s12 = sshll.u32 %s0, 4
      %s13 = int_to_ptr.hbm [resolvable:$true] %s12
      %s14 = sshll.u32 [#allocation2], 4
      %s15 = int_to_ptr.vmem [resolvable:$true] %s14
      %20 = dma.hbm_to_vmem [thread:$0]  %s13, 256, %s15, [#allocation3], 128, 128, 8
    $region5: #{tpu_custom_call.1} parent=1 // pred_fallthru
      _
    // Predicated region
    $region6: #{tpu_custom_call.1} parent=1 // pred_check
      _
    $region7: #{tpu_custom_call.1} parent=1 // pred_check_branch
      %22 = sbr.rel (0) target = $region9
    $region8: #{tpu_custom_call.1} parent=1 // pred_region
      %24 = dma.done [#allocation3], 256
    $region9: #{tpu_custom_call.1} parent=1 // pred_fallthru
      _
    %v25 = vld [vmem:[#allocation2] sm:$0xff]
    %v26 = vld [vmem:[#allocation2 + $0x8] sm:$0xff]
    %v27 = vmax.f32 %v25, 0.0
    %v28 = vmax.f32 %v26, 0.0
    %v29 = vmin.f32 %v27, 2.21
    %v30 = vmin.f32 %v28, 2.21
    %v31 = vmul.f32 %v29, %v29
    %v32 = vmul.f32 %v30, %v30
    %v33 = vmul.f32 %v31, -3.724078e-05
    %v34 = vmul.f32 %v32, -3.724078e-05
    %v35 = vadd.f32 %v33, 0.0033304081
    %v36 = vadd.f32 %v34, 0.0033304081
    %v37 = vmul.f32 %v35, %v31
    %v38 = vmul.f32 %v36, %v32
    %v39 = vadd.f32 %v37, -0.13224518
    %v40 = vadd.f32 %v38, -0.13224518
    %v41 = vmul.f32 %v39, %v31
    %v42 = vmul.f32 %v40, %v32
    %v43 = vadd.f32 %v41, 1.5707926
    %v44 = vadd.f32 %v42, 1.5707926
    %v45 = vmul.f32 %v29, %v43
    %v46 = vmul.f32 %v30, %v44
    %v47 = vmin.f32 %v45, 2.21
    %v48 = vmin.f32 %v46, 2.21
    %49 = vst [vmem:[#allocation5] sm:$0xff] %v47
    %50 = vst [vmem:[#allocation5 + $0x8] sm:$0xff] %v48
    // Predicated region
    $region10: #{tpu_custom_call.1} parent=1 // pred_check
      _
    $region11: #{tpu_custom_call.1} parent=1 // pred_check_branch
      %52 = sbr.rel (0) target = $region13
    $region12: #{tpu_custom_call.1} parent=1 // pred_region
      %54 = vsyncadd [#allocation4], 0
      %s55 = sshll.u32 [#allocation5], 4
      %s56 = int_to_ptr.vmem [resolvable:$true] %s55
      %s57 = sshll.u32 %s1, 4
      %s58 = int_to_ptr.hbm [resolvable:$true] %s57
      %63 = dma.vmem_to_hbm [thread:$0]  %s56, 256, %s58, [#allocation4], 128, 128, 8
    $region13: #{tpu_custom_call.1} parent=1 // pred_fallthru
      _
    // Predicated region
    $region14: #{tpu_custom_call.1} parent=1 // pred_check
      _
    $region15: #{tpu_custom_call.1} parent=1 // pred_check_branch
      %65 = sbr.rel (0) target = $region17
    $region16: #{tpu_custom_call.1} parent=1 // pred_region
      %67 = dma.done [#allocation4], 256
    $region17: #{tpu_custom_call.1} parent=1 // pred_fallthru
      _
    %68 = vsyncpa [#allocation3], 1
    %69 = vsyncpa [#allocation4], 1

</llo_original>
